<compile_context>
chip_gen: v7x
topology: tpu7x:2x2x1
jax: 0.10.0
libtpu: 0.0.40
codegen_flags: <defaults>
</compile_context>

<pallas_src>
import jax
import jax.numpy as jnp
from jax.experimental import pallas as pl
from jax.experimental.pallas import tpu as pltpu

_NEG_INF = -1e30


def _round_up(x, m):
    return -(-x // m) * m


def _make_head_kernel(num_pathways, steps, grid_steps):
    """Kernel over grid (batch_tiles, s_steps)."""

    def kernel(*refs):
        x_refs = refs[:num_pathways]
        w_refs = refs[num_pathways:2 * num_pathways]
        b_ref = refs[2 * num_pathways]
        out_ref = refs[2 * num_pathways + 1]
        acc_refs = refs[2 * num_pathways + 2:]

        k = pl.program_id(1)

        @pl.when(k == 0)
        def _init():
            for acc in acc_refs:
                acc[...] = jnp.zeros_like(acc)

        # Partial global-average-pool: sum this S tile along the lane axis,
        # accumulating in f32 regardless of input dtype.
        # TODO(synk): if the bundle dump shows the per-step lane-reduce
        # relayout (C: sublanes -> lanes) binding on the XLU, keep C on
        # sublanes during the loop and relayout once in the finalize.
        for p in range(num_pathways):
            x_ref, acc = x_refs[p], acc_refs[p]
            if steps[p] == grid_steps:
                acc[...] += jnp.sum(x_ref[...].astype(jnp.float32), axis=-1)
            else:
                # This pathway has fewer S tiles; its BlockSpec clamps the
                # block index so no new data is DMA'd for k >= steps[p].
                @pl.when(k < steps[p])
                def _acc(x_ref=x_ref, acc=acc):
                    acc[...] += jnp.sum(x_ref[...].astype(jnp.float32), axis=-1)

        @pl.when(k == grid_steps - 1)
        def _finalize():
            # Concat-free FC; the 1/S pooling scale is folded into the weights
            # in the wrapper, so the accumulators feed the MXU directly.
            logits = b_ref[...].astype(jnp.float32)
            for p in range(num_pathways):
                pooled = acc_refs[p][...].astype(w_refs[p].dtype)
                logits = logits + jnp.dot(
                    pooled, w_refs[p][...], preferred_element_type=jnp.float32)
            # Softmax over padded classes; padded columns carry a -1e30 bias
            # so they get exactly zero probability.
            m = jnp.max(logits, axis=-1, keepdims=True)
            e = jnp.exp(logits - m)
            inv = pl.reciprocal(jnp.sum(e, axis=-1, keepdims=True), approx=True)
            out_ref[...] = (e * inv).astype(out_ref.dtype)

    return kernel


def _vmem_capacity_bytes():
    try:
        return int(pltpu.get_tpu_info().vmem_capacity_bytes)
    except Exception:
        return 64 * 1024 * 1024  # v7x per-core VMEM; safe lower bound everywhere.


def _bt_candidates(n):
    cands = [bt for bt in (64, 32, 16, 8) if n % bt == 0]
    if not cands:
        return [n]
    # v7x has 2 TensorCores: prefer batch tiles that give >= 2 "parallel"
    # grid blocks so both cores get work; small N falls back to one tile.
    multi = [bt for bt in cands if n // bt >= 2]
    single = [bt for bt in cands if n // bt < 2]
    return (multi + single) if multi else cands


def _plan_s_axis(s_list, c_list, bt, in_itemsize, fixed_bytes, budget, min_lane):
    """Pick per-pathway S tiles (full S or 128-lane multiples, floor min_lane)
    and reduction-step counts so the resident VMEM footprint fits `budget`."""

    def make(g):
        ts, steps = [], []
        for s in s_list:
            if g == 1:
                t = s
            else:
                t = _round_up(-(-s // g), 128)
                cap = _round_up(s, 128)
                floor = min(_round_up(min_lane, 128), cap)
                t = max(min(t, cap), floor)
                if t >= s:          # tiling doesn't help this pathway
                    t = s
            ts.append(t)
            steps.append(-(-s // t))
        inp = 2 * bt * sum(c * t for c, t in zip(c_list, ts)) * in_itemsize
        return {"ts": ts, "steps": steps, "grid_steps": max(steps),
                "bytes": inp + fixed_bytes}

    g_max = max(-(-s // 128) for s in s_list)
    best = make(1)
    if best["bytes"] <= budget:
        return best, True
    for g in range(2, g_max + 1):
        plan = make(g)
        if plan["bytes"] <= budget:
            return plan, True
        if plan["bytes"] < best["bytes"]:
            best = plan
    return best, False


def _choose_tiling(n, c_list, s_list, in_itemsize, w_itemsize, out_itemsize,
                   k_pad, budget):
    fallback = None
    # Preference order: keep S tiles >= 512 lanes (DMA burst efficiency) and
    # shrink batch_tile first; only then allow smaller S tiles.
    for min_lane in (512, 128):
        for bt in _bt_candidates(n):
            fixed = (2 * sum(c_list) * k_pad * w_itemsize   # weights (<=2 buffers)
                     + 2 * k_pad * 4                        # bias
                     + 2 * bt * k_pad * out_itemsize        # output double buffer
                     + bt * sum(c_list) * 4)                # f32 pooled-sum scratch
            plan, fits = _plan_s_axis(s_list, c_list, bt, in_itemsize, fixed,
                                      budget, min_lane)
            if fits:
                return bt, plan
            if fallback is None or plan["bytes"] < fallback[1]["bytes"]:
                fallback = (bt, plan)
    # TODO(synk): if even the smallest plan exceeds the budget (very large C),
    # add a C-dimension grid axis instead of shrinking S further.
    return fallback


def resnet_basic_head(inputs, weight, bias, num_classes):
    """Eval forward of ResNetBasicHead (global avg pool + linear + softmax).

    inputs: list of pathway activations, each NCTHW.
    weight: (sum(dim_in), num_classes)  (torch Linear weight, transposed).
    bias:   (num_classes,)
    """
    num_pathways = len(inputs)
    n = int(inputs[0].shape[0])
    assert all(int(x.shape[0]) == n for x in inputs)

    # Free reshape (contiguous dim merge, no extra HBM pass): NCTHW -> (N,C,S).
    xs, c_list, s_list = [], [], []
    for x in inputs:
        _, c, t, h, w = x.shape
        xs.append(x.reshape(n, c, t * h * w))
        c_list.append(int(c))
        s_list.append(int(t * h * w))
    assert sum(c_list) == weight.shape[0]

    out_dtype = xs[0].dtype
    w_dtype = weight.dtype
    in_itemsize = jnp.dtype(xs[0].dtype).itemsize
    w_itemsize = jnp.dtype(w_dtype).itemsize
    out_itemsize = jnp.dtype(out_dtype).itemsize

    num_cls = int(num_classes)
    k_pad = _round_up(max(num_cls, 1), 128)

    cap = _vmem_capacity_bytes()
    budget = int(cap * 0.70)
    bt, plan = _choose_tiling(n, c_list, s_list, in_itemsize, w_itemsize,
                              out_itemsize, k_pad, budget)
    ts, steps, grid_steps = plan["ts"], plan["steps"], plan["grid_steps"]
    vmem_limit = int(min(0.9 * cap, max(32 << 20, 1.25 * plan["bytes"])))

    # Zero-pad S only where tiling requires it (zeros don't change the sum;
    # the 1/S scale below uses the true S).
    xs_proc = []
    for x, s, tile, n_steps in zip(xs, s_list, ts, steps):
        need = n_steps * tile
        if need > s:
            x = jnp.pad(x, ((0, 0), (0, 0), (0, need - s)))
        xs_proc.append(x)

    # Per-pathway weight slices in the model's native dtype with the 1/S
    # pooling scale folded in; classes zero-padded to a lane-dense multiple of
    # 128.  Bias is f32 with -1e30 on padded classes (softmax -> exactly 0).
    w_slices = []
    off = 0
    for c, s in zip(c_list, s_list):
        w_p = (weight[off:off + c].astype(jnp.float32) / float(s)).astype(w_dtype)
        w_slices.append(jnp.pad(w_p, ((0, 0), (0, k_pad - num_cls))))
        off += c
    b_pad = jnp.full((1, k_pad), _NEG_INF, dtype=jnp.float32)
    b_pad = b_pad.at[0, :num_cls].set(bias.astype(jnp.float32))

    kernel = _make_head_kernel(num_pathways, tuple(steps), grid_steps)

    def _clamped_imap(last):
        def imap(i, j):
            return (i, 0, jnp.minimum(j, last))
        return imap

    def _x_spec(p):
        shape = (bt, c_list[p], ts[p])
        if steps[p] == grid_steps:
            return pl.BlockSpec(shape, lambda i, j: (i, 0, j))
        return pl.BlockSpec(shape, _clamped_imap(steps[p] - 1))

    def _const_spec(shape, single_buffer):
        if single_buffer:
            # Constant index_map: one resident copy is enough (no double buffer).
            return pl.BlockSpec(shape, lambda i, j: (0, 0),
                                pipeline_mode=pl.Buffered(1))
        return pl.BlockSpec(shape, lambda i, j: (0, 0))

    def _build(single_buffer_consts):
        in_specs = [_x_spec(p) for p in range(num_pathways)]
        in_specs += [_const_spec((c_list[p], k_pad), single_buffer_consts)
                     for p in range(num_pathways)]
        in_specs.append(_const_spec((1, k_pad), single_buffer_consts))
        return pl.pallas_call(
            kernel,
            out_shape=jax.ShapeDtypeStruct((n, k_pad), out_dtype),
            grid_spec=pltpu.PrefetchScalarGridSpec(
                num_scalar_prefetch=0,
                grid=(n // bt, grid_steps),
                in_specs=in_specs,
                out_specs=pl.BlockSpec((bt, k_pad), lambda i, j: (i, 0)),
                scratch_shapes=[pltpu.VMEM((bt, c), jnp.float32)
                                for c in c_list]),
            compiler_params=pltpu.CompilerParams(
                dimension_semantics=("parallel", "arbitrary"),
                vmem_limit_bytes=vmem_limit))

    try:
        out_padded = _build(single_buffer_consts=True)(*xs_proc, *w_slices, b_pad)
    except Exception:
        # pl.Buffered(1) not accepted by this jax/Mosaic build: fall back to
        # default double-buffered constants (identical results).
        out_padded = _build(single_buffer_consts=False)(*xs_proc, *w_slices, b_pad)
    return out_padded[:, :num_cls]


def _reference(inputs, weight, bias):
    # Pure-JAX reference mirroring the PyTorch eval forward.
    pooled = [jnp.mean(x, axis=(2, 3, 4)) for x in inputs]       # (N, Cp)
    x = jnp.concatenate(pooled, axis=1)                          # (N, Csum)
    logits = x @ weight + bias
    return jax.nn.softmax(logits, axis=-1)


if __name__ == "__main__":
    key = jax.random.PRNGKey(0)
    k0, k1, kw, kb = jax.random.split(key, 4)

    # Small shapes consistent with the module: 2 pathways (slow/fast style).
    N = 2
    dim_in = [32, 16]
    num_classes = 10
    x0 = jax.random.normal(k0, (N, dim_in[0], 2, 4, 4), dtype=jnp.float32)  # NCTHW
    x1 = jax.random.normal(k1, (N, dim_in[1], 4, 4, 4), dtype=jnp.float32)  # NCTHW

    # Deterministic nn.Linear(sum(dim_in), num_classes)-style init.
    csum = sum(dim_in)
    bound = 1.0 / (csum ** 0.5)
    weight = jax.random.uniform(kw, (csum, num_classes), jnp.float32, -bound, bound)
    bias = jax.random.uniform(kb, (num_classes,), jnp.float32, -bound, bound)

    out = resnet_basic_head([x0, x1], weight, bias, num_classes)
    out = jax.block_until_ready(out)

    ref = _reference([x0, x1], weight, bias)
    assert out.shape == (N, num_classes)
    # Softmax denominator uses the EUP approximate reciprocal -> allow ~1e-3.
    assert jnp.allclose(out, ref, atol=2e-3, rtol=2e-3), "mismatch vs reference"

    print("KERNEL_OK")
</pallas_src>

<mosaic_0001>
module attributes {stable_mosaic.version = 11 : i64} {
  func.func @kernel(%arg0: i32, %arg1: i32, %arg2: memref<2x32x32xf32, #tpu.memory_space<vmem>>, %arg3: memref<2x16x64xf32, #tpu.memory_space<vmem>>, %arg4: memref<32x128xf32, #tpu.memory_space<vmem>>, %arg5: memref<16x128xf32, #tpu.memory_space<vmem>>, %arg6: memref<1x128xf32, #tpu.memory_space<vmem>>, %arg7: memref<2x128xf32, #tpu.memory_space<vmem>>, %arg8: memref<2x32xf32, #tpu.memory_space<vmem>>, %arg9: memref<2x16xf32, #tpu.memory_space<vmem>>) attributes {dimension_semantics = [#tpu.dimension_semantics<parallel>, #tpu.dimension_semantics<arbitrary>], iteration_bounds = array<i64: 1, 1>, scalar_prefetch = 0 : i64, scratch_operands = 2 : i64, tpu.core_type = #tpu.core_type<tc>, window_params = [{transform_indices = @transform_0, window_bounds = array<i64: 2, 32, 32>}, {transform_indices = @transform_1, window_bounds = array<i64: 2, 16, 64>}, {pipeline_mode = #tpu.pipeline_mode<synchronous>, transform_indices = @transform_2, window_bounds = array<i64: 32, 128>}, {pipeline_mode = #tpu.pipeline_mode<synchronous>, transform_indices = @transform_3, window_bounds = array<i64: 16, 128>}, {pipeline_mode = #tpu.pipeline_mode<synchronous>, transform_indices = @transform_4, window_bounds = array<i64: 1, 128>}, {transform_indices = @transform_5, window_bounds = array<i64: 2, 128>}]} {
    %c0_i32 = arith.constant 0 : i32
    %0 = arith.cmpi eq, %arg1, %c0_i32 : i32
    %1 = arith.extui %0 : i1 to i32
    %c0_i32_0 = arith.constant 0 : i32
    %2 = arith.cmpi ne, %1, %c0_i32_0 : i32
    scf.if %2 {
      %cst_17 = arith.constant 0.000000e+00 : f32
      %16 = vector.broadcast %cst_17 : f32 to vector<2x32xf32>
      %c0_18 = arith.constant 0 : index
      %c0_19 = arith.constant 0 : index
      %17 = vector.load %arg8[%c0_18, %c0_19] : memref<2x32xf32, #tpu.memory_space<vmem>>, vector<2x32xf32>
      tpu.vector_store %arg8[%c0_18, %c0_19], %16 {strides = array<i32>} : memref<2x32xf32, #tpu.memory_space<vmem>>, vector<2x32xf32>,
      %cst_20 = arith.constant 0.000000e+00 : f32
      %18 = vector.broadcast %cst_20 : f32 to vector<2x16xf32>
      %c0_21 = arith.constant 0 : index
      %c0_22 = arith.constant 0 : index
      %19 = vector.load %arg9[%c0_21, %c0_22] : memref<2x16xf32, #tpu.memory_space<vmem>>, vector<2x16xf32>
      tpu.vector_store %arg9[%c0_21, %c0_22], %18 {strides = array<i32>} : memref<2x16xf32, #tpu.memory_space<vmem>>, vector<2x16xf32>,
    } else {
    }
    %c0 = arith.constant 0 : index
    %c0_1 = arith.constant 0 : index
    %3 = vector.load %arg8[%c0, %c0_1] : memref<2x32xf32, #tpu.memory_space<vmem>>, vector<2x32xf32>
    %c0_2 = arith.constant 0 : index
    %c0_3 = arith.constant 0 : index
    %c0_4 = arith.constant 0 : index
    %4 = vector.load %arg2[%c0_2, %c0_3, %c0_4] : memref<2x32x32xf32, #tpu.memory_space<vmem>>, vector<2x32x32xf32>
    %cst = arith.constant dense<0.000000e+00> : vector<2x32xf32>
    %5 = vector.multi_reduction <add>, %4, %cst [2] : vector<2x32x32xf32> to vector<2x32xf32>
    %6 = arith.addf %3, %5 : vector<2x32xf32>
    %c0_5 = arith.constant 0 : index
    %c0_6 = arith.constant 0 : index
    %7 = vector.load %arg8[%c0_5, %c0_6] : memref<2x32xf32, #tpu.memory_space<vmem>>, vector<2x32xf32>
    tpu.vector_store %arg8[%c0_5, %c0_6], %6 {strides = array<i32>} : memref<2x32xf32, #tpu.memory_space<vmem>>, vector<2x32xf32>,
    %c0_7 = arith.constant 0 : index
    %c0_8 = arith.constant 0 : index
    %8 = vector.load %arg9[%c0_7, %c0_8] : memref<2x16xf32, #tpu.memory_space<vmem>>, vector<2x16xf32>
    %c0_9 = arith.constant 0 : index
    %c0_10 = arith.constant 0 : index
    %c0_11 = arith.constant 0 : index
    %9 = vector.load %arg3[%c0_9, %c0_10, %c0_11] : memref<2x16x64xf32, #tpu.memory_space<vmem>>, vector<2x16x64xf32>
    %cst_12 = arith.constant dense<0.000000e+00> : vector<2x16xf32>
    %10 = vector.multi_reduction <add>, %9, %cst_12 [2] : vector<2x16x64xf32> to vector<2x16xf32>
    %11 = arith.addf %8, %10 : vector<2x16xf32>
    %c0_13 = arith.constant 0 : index
    %c0_14 = arith.constant 0 : index
    %12 = vector.load %arg9[%c0_13, %c0_14] : memref<2x16xf32, #tpu.memory_space<vmem>>, vector<2x16xf32>
    tpu.vector_store %arg9[%c0_13, %c0_14], %11 {strides = array<i32>} : memref<2x16xf32, #tpu.memory_space<vmem>>, vector<2x16xf32>,
    %c0_i32_15 = arith.constant 0 : i32
    %13 = arith.cmpi eq, %arg1, %c0_i32_15 : i32
    %14 = arith.extui %13 : i1 to i32
    %c0_i32_16 = arith.constant 0 : i32
    %15 = arith.cmpi ne, %14, %c0_i32_16 : i32
    scf.if %15 {
      %c0_17 = arith.constant 0 : index
      %c0_18 = arith.constant 0 : index
      %16 = vector.load %arg6[%c0_17, %c0_18] : memref<1x128xf32, #tpu.memory_space<vmem>>, vector<1x128xf32>
      %c0_19 = arith.constant 0 : index
      %c0_20 = arith.constant 0 : index
      %17 = vector.load %arg8[%c0_19, %c0_20] : memref<2x32xf32, #tpu.memory_space<vmem>>, vector<2x32xf32>
      %c0_21 = arith.constant 0 : index
      %c0_22 = arith.constant 0 : index
      %18 = vector.load %arg4[%c0_21, %c0_22] : memref<32x128xf32, #tpu.memory_space<vmem>>, vector<32x128xf32>
      %cst_23 = arith.constant dense<0.000000e+00> : vector<2x128xf32>
      %19 = tpu.matmul %17, %18, %cst_23 {dimension_numbers = #tpu.dot_dimension_numbers<[1], [0], [0], [1], [0, 0, 1, 1], [], []>} : vector<2x32xf32>, vector<32x128xf32>, vector<2x128xf32> -> vector<2x128xf32>
      %20 = vector.broadcast %16 : vector<1x128xf32> to vector<2x128xf32>
      %21 = arith.addf %20, %19 : vector<2x128xf32>
      %c0_24 = arith.constant 0 : index
      %c0_25 = arith.constant 0 : index
      %22 = vector.load %arg9[%c0_24, %c0_25] : memref<2x16xf32, #tpu.memory_space<vmem>>, vector<2x16xf32>
      %c0_26 = arith.constant 0 : index
      %c0_27 = arith.constant 0 : index
      %23 = vector.load %arg5[%c0_26, %c0_27] : memref<16x128xf32, #tpu.memory_space<vmem>>, vector<16x128xf32>
      %cst_28 = arith.constant dense<0.000000e+00> : vector<2x128xf32>
      %24 = tpu.matmul %22, %23, %cst_28 {dimension_numbers = #tpu.dot_dimension_numbers<[1], [0], [0], [1], [0, 0, 1, 1], [], []>} : vector<2x16xf32>, vector<16x128xf32>, vector<2x128xf32> -> vector<2x128xf32>
      %25 = arith.addf %21, %24 : vector<2x128xf32>
      %cst_29 = arith.constant dense<0xFF800000> : vector<2xf32>
      %26 = vector.multi_reduction <maximumf>, %25, %cst_29 [1] : vector<2x128xf32> to vector<2xf32>
      %27 = vector.shape_cast %26 : vector<2xf32> to vector<2x1xf32>
      %28 = vector.broadcast %27 : vector<2x1xf32> to vector<2x128xf32>
      %29 = arith.subf %25, %28 : vector<2x128xf32>
      %30 = math.exp %29 : vector<2x128xf32>
      %cst_30 = arith.constant dense<0.000000e+00> : vector<2xf32>
      %31 = vector.multi_reduction <add>, %30, %cst_30 [1] : vector<2x128xf32> to vector<2xf32>
      %32 = vector.shape_cast %31 : vector<2xf32> to vector<2x1xf32>
      %33 = tpu.reciprocal %32 {approx = true} : vector<2x1xf32> -> vector<2x1xf32>
      %34 = vector.broadcast %33 : vector<2x1xf32> to vector<2x128xf32>
      %35 = arith.mulf %30, %34 : vector<2x128xf32>
      %c0_31 = arith.constant 0 : index
      %c0_32 = arith.constant 0 : index
      %36 = vector.load %arg7[%c0_31, %c0_32] : memref<2x128xf32, #tpu.memory_space<vmem>>, vector<2x128xf32>
      tpu.vector_store %arg7[%c0_31, %c0_32], %35 {strides = array<i32>} : memref<2x128xf32, #tpu.memory_space<vmem>>, vector<2x128xf32>,
    } else {
    }
    return
  }
  func.func @transform_0(%arg0: i32, %arg1: i32) -> (i32, i32, i32) {
    %c0_i32 = arith.constant 0 : i32
    %c0_i32_0 = arith.constant 0 : i32
    return %arg0, %c0_i32, %arg1 : i32, i32, i32
  }
  func.func @transform_1(%arg0: i32, %arg1: i32) -> (i32, i32, i32) {
    %c0_i32 = arith.constant 0 : i32
    %c0_i32_0 = arith.constant 0 : i32
    return %arg0, %c0_i32, %arg1 : i32, i32, i32
  }
  func.func @transform_2(%arg0: i32, %arg1: i32) -> (i32, i32) {
    %c0_i32 = arith.constant 0 : i32
    %c0_i32_0 = arith.constant 0 : i32
    %c0_i32_1 = arith.constant 0 : i32
    return %c0_i32, %c0_i32_0 : i32, i32
  }
  func.func @transform_3(%arg0: i32, %arg1: i32) -> (i32, i32) {
    %c0_i32 = arith.constant 0 : i32
    %c0_i32_0 = arith.constant 0 : i32
    %c0_i32_1 = arith.constant 0 : i32
    return %c0_i32, %c0_i32_0 : i32, i32
  }
  func.func @transform_4(%arg0: i32, %arg1: i32) -> (i32, i32) {
    %c0_i32 = arith.constant 0 : i32
    %c0_i32_0 = arith.constant 0 : i32
    %c0_i32_1 = arith.constant 0 : i32
    return %c0_i32, %c0_i32_0 : i32, i32
  }
  func.func @transform_5(%arg0: i32, %arg1: i32) -> (i32, i32) {
    %c0_i32 = arith.constant 0 : i32
    %c0_i32_0 = arith.constant 0 : i32
    return %arg0, %c0_i32 : i32, i32
  }
}

module attributes {stable_mosaic.version = 11 : i64} {
  func.func @kernel(%arg0: i32, %arg1: i32, %arg2: memref<2x32x32xf32, #tpu.memory_space<vmem>>, %arg3: memref<2x16x64xf32, #tpu.memory_space<vmem>>, %arg4: memref<32x128xf32, #tpu.memory_space<vmem>>, %arg5: memref<16x128xf32, #tpu.memory_space<vmem>>, %arg6: memref<1x128xf32, #tpu.memory_space<vmem>>, %arg7: memref<2x128xf32, #tpu.memory_space<vmem>>, %arg8: memref<2x32xf32, #tpu.memory_space<vmem>>, %arg9: memref<2x16xf32, #tpu.memory_space<vmem>>) attributes {dimension_semantics = [#tpu.dimension_semantics<parallel>, #tpu.dimension_semantics<arbitrary>], iteration_bounds = array<i64: 1, 1>, scalar_prefetch = 0 : i64, scratch_operands = 2 : i64, tpu.core_type = #tpu.core_type<tc>, window_params = [{transform_indices = @transform_0, window_bounds = array<i64: 2, 32, 32>}, {transform_indices = @transform_1, window_bounds = array<i64: 2, 16, 64>}, {pipeline_mode = #tpu.pipeline_mode<synchronous>, transform_indices = @transform_2, window_bounds = array<i64: 32, 128>}, {pipeline_mode = #tpu.pipeline_mode<synchronous>, transform_indices = @transform_3, window_bounds = array<i64: 16, 128>}, {pipeline_mode = #tpu.pipeline_mode<synchronous>, transform_indices = @transform_4, window_bounds = array<i64: 1, 128>}, {transform_indices = @transform_5, window_bounds = array<i64: 2, 128>}]} {
    %c0_i32 = arith.constant 0 : i32
    %0 = arith.cmpi eq, %arg1, %c0_i32 : i32
    %1 = arith.extui %0 : i1 to i32
    %c0_i32_0 = arith.constant 0 : i32
    %2 = arith.cmpi ne, %1, %c0_i32_0 : i32
    scf.if %2 {
      %cst_17 = arith.constant 0.000000e+00 : f32
      %16 = vector.broadcast %cst_17 : f32 to vector<2x32xf32>
      %c0_18 = arith.constant 0 : index
      %c0_19 = arith.constant 0 : index
      %17 = vector.load %arg8[%c0_18, %c0_19] : memref<2x32xf32, #tpu.memory_space<vmem>>, vector<2x32xf32>
      tpu.vector_store %arg8[%c0_18, %c0_19], %16 {strides = array<i32>} : memref<2x32xf32, #tpu.memory_space<vmem>>, vector<2x32xf32>,
      %cst_20 = arith.constant 0.000000e+00 : f32
      %18 = vector.broadcast %cst_20 : f32 to vector<2x16xf32>
      %c0_21 = arith.constant 0 : index
      %c0_22 = arith.constant 0 : index
      %19 = vector.load %arg9[%c0_21, %c0_22] : memref<2x16xf32, #tpu.memory_space<vmem>>, vector<2x16xf32>
      tpu.vector_store %arg9[%c0_21, %c0_22], %18 {strides = array<i32>} : memref<2x16xf32, #tpu.memory_space<vmem>>, vector<2x16xf32>,
    } else {
    }
    %c0 = arith.constant 0 : index
    %c0_1 = arith.constant 0 : index
    %3 = vector.load %arg8[%c0, %c0_1] : memref<2x32xf32, #tpu.memory_space<vmem>>, vector<2x32xf32>
    %c0_2 = arith.constant 0 : index
    %c0_3 = arith.constant 0 : index
    %c0_4 = arith.constant 0 : index
    %4 = vector.load %arg2[%c0_2, %c0_3, %c0_4] : memref<2x32x32xf32, #tpu.memory_space<vmem>>, vector<2x32x32xf32>
    %cst = arith.constant dense<0.000000e+00> : vector<2x32xf32>
    %5 = vector.multi_reduction <add>, %4, %cst [2] : vector<2x32x32xf32> to vector<2x32xf32>
    %6 = arith.addf %3, %5 : vector<2x32xf32>
    %c0_5 = arith.constant 0 : index
    %c0_6 = arith.constant 0 : index
    %7 = vector.load %arg8[%c0_5, %c0_6] : memref<2x32xf32, #tpu.memory_space<vmem>>, vector<2x32xf32>
    tpu.vector_store %arg8[%c0_5, %c0_6], %6 {strides = array<i32>} : memref<2x32xf32, #tpu.memory_space<vmem>>, vector<2x32xf32>,
    %c0_7 = arith.constant 0 : index
    %c0_8 = arith.constant 0 : index
    %8 = vector.load %arg9[%c0_7, %c0_8] : memref<2x16xf32, #tpu.memory_space<vmem>>, vector<2x16xf32>
    %c0_9 = arith.constant 0 : index
    %c0_10 = arith.constant 0 : index
    %c0_11 = arith.constant 0 : index
    %9 = vector.load %arg3[%c0_9, %c0_10, %c0_11] : memref<2x16x64xf32, #tpu.memory_space<vmem>>, vector<2x16x64xf32>
    %cst_12 = arith.constant dense<0.000000e+00> : vector<2x16xf32>
    %10 = vector.multi_reduction <add>, %9, %cst_12 [2] : vector<2x16x64xf32> to vector<2x16xf32>
    %11 = arith.addf %8, %10 : vector<2x16xf32>
    %c0_13 = arith.constant 0 : index
    %c0_14 = arith.constant 0 : index
    %12 = vector.load %arg9[%c0_13, %c0_14] : memref<2x16xf32, #tpu.memory_space<vmem>>, vector<2x16xf32>
    tpu.vector_store %arg9[%c0_13, %c0_14], %11 {strides = array<i32>} : memref<2x16xf32, #tpu.memory_space<vmem>>, vector<2x16xf32>,
    %c0_i32_15 = arith.constant 0 : i32
    %13 = arith.cmpi eq, %arg1, %c0_i32_15 : i32
    %14 = arith.extui %13 : i1 to i32
    %c0_i32_16 = arith.constant 0 : i32
    %15 = arith.cmpi ne, %14, %c0_i32_16 : i32
    scf.if %15 {
      %c0_17 = arith.constant 0 : index
      %c0_18 = arith.constant 0 : index
      %16 = vector.load %arg6[%c0_17, %c0_18] : memref<1x128xf32, #tpu.memory_space<vmem>>, vector<1x128xf32>
      %c0_19 = arith.constant 0 : index
      %c0_20 = arith.constant 0 : index
      %17 = vector.load %arg8[%c0_19, %c0_20] : memref<2x32xf32, #tpu.memory_space<vmem>>, vector<2x32xf32>
      %c0_21 = arith.constant 0 : index
      %c0_22 = arith.constant 0 : index
      %18 = vector.load %arg4[%c0_21, %c0_22] : memref<32x128xf32, #tpu.memory_space<vmem>>, vector<32x128xf32>
      %cst_23 = arith.constant dense<0.000000e+00> : vector<2x128xf32>
      %19 = tpu.matmul %17, %18, %cst_23 {dimension_numbers = #tpu.dot_dimension_numbers<[1], [0], [0], [1], [0, 0, 1, 1], [], []>} : vector<2x32xf32>, vector<32x128xf32>, vector<2x128xf32> -> vector<2x128xf32>
      %20 = vector.broadcast %16 : vector<1x128xf32> to vector<2x128xf32>
      %21 = arith.addf %20, %19 : vector<2x128xf32>
      %c0_24 = arith.constant 0 : index
      %c0_25 = arith.constant 0 : index
      %22 = vector.load %arg9[%c0_24, %c0_25] : memref<2x16xf32, #tpu.memory_space<vmem>>, vector<2x16xf32>
      %c0_26 = arith.constant 0 : index
      %c0_27 = arith.constant 0 : index
      %23 = vector.load %arg5[%c0_26, %c0_27] : memref<16x128xf32, #tpu.memory_space<vmem>>, vector<16x128xf32>
      %cst_28 = arith.constant dense<0.000000e+00> : vector<2x128xf32>
      %24 = tpu.matmul %22, %23, %cst_28 {dimension_numbers = #tpu.dot_dimension_numbers<[1], [0], [0], [1], [0, 0, 1, 1], [], []>} : vector<2x16xf32>, vector<16x128xf32>, vector<2x128xf32> -> vector<2x128xf32>
      %25 = arith.addf %21, %24 : vector<2x128xf32>
      %cst_29 = arith.constant dense<0xFF800000> : vector<2xf32>
      %26 = vector.multi_reduction <maximumf>, %25, %cst_29 [1] : vector<2x128xf32> to vector<2xf32>
      %27 = vector.shape_cast %26 : vector<2xf32> to vector<2x1xf32>
      %28 = vector.broadcast %27 : vector<2x1xf32> to vector<2x128xf32>
      %29 = arith.subf %25, %28 : vector<2x128xf32>
      %30 = math.exp %29 : vector<2x128xf32>
      %cst_30 = arith.constant dense<0.000000e+00> : vector<2xf32>
      %31 = vector.multi_reduction <add>, %30, %cst_30 [1] : vector<2x128xf32> to vector<2xf32>
      %32 = vector.shape_cast %31 : vector<2xf32> to vector<2x1xf32>
      %33 = tpu.reciprocal %32 {approx = true} : vector<2x1xf32> -> vector<2x1xf32>
      %34 = vector.broadcast %33 : vector<2x1xf32> to vector<2x128xf32>
      %35 = arith.mulf %30, %34 : vector<2x128xf32>
      %c0_31 = arith.constant 0 : index
      %c0_32 = arith.constant 0 : index
      %36 = vector.load %arg7[%c0_31, %c0_32] : memref<2x128xf32, #tpu.memory_space<vmem>>, vector<2x128xf32>
      tpu.vector_store %arg7[%c0_31, %c0_32], %35 {strides = array<i32>} : memref<2x128xf32, #tpu.memory_space<vmem>>, vector<2x128xf32>,
    } else {
    }
    return
  }
  func.func @transform_0(%arg0: i32, %arg1: i32) -> (i32, i32, i32) {
    %c0_i32 = arith.constant 0 : i32
    %c0_i32_0 = arith.constant 0 : i32
    return %arg0, %c0_i32, %arg1 : i32, i32, i32
  }
  func.func @transform_1(%arg0: i32, %arg1: i32) -> (i32, i32, i32) {
    %c0_i32 = arith.constant 0 : i32
    %c0_i32_0 = arith.constant 0 : i32
    return %arg0, %c0_i32, %arg1 : i32, i32, i32
  }
  func.func @transform_2(%arg0: i32, %arg1: i32) -> (i32, i32) {
    %c0_i32 = arith.constant 0 : i32
    %c0_i32_0 = arith.constant 0 : i32
    %c0_i32_1 = arith.constant 0 : i32
    return %c0_i32, %c0_i32_0 : i32, i32
  }
  func.func @transform_3(%arg0: i32, %arg1: i32) -> (i32, i32) {
    %c0_i32 = arith.constant 0 : i32
    %c0_i32_0 = arith.constant 0 : i32
    %c0_i32_1 = arith.constant 0 : i32
    return %c0_i32, %c0_i32_0 : i32, i32
  }
  func.func @transform_4(%arg0: i32, %arg1: i32) -> (i32, i32) {
    %c0_i32 = arith.constant 0 : i32
    %c0_i32_0 = arith.constant 0 : i32
    %c0_i32_1 = arith.constant 0 : i32
    return %c0_i32, %c0_i32_0 : i32, i32
  }
  func.func @transform_5(%arg0: i32, %arg1: i32) -> (i32, i32) {
    %c0_i32 = arith.constant 0 : i32
    %c0_i32_0 = arith.constant 0 : i32
    return %arg0, %c0_i32 : i32, i32
  }
}

</mosaic_0001>

<llo_original>
// kernel: tpu_custom_call.1
$region0: #{tpu_custom_call.1}
  #allocation0 [shape = 'u32[]', space=smem, size = 0x4, offset = 0x4, fixed_abs, tag = 'smem constant byte address 0x4 - core index']
  #allocation1 [shape = 'u32[144,128]{1,0:T(1,128)}', space=vmem, size = 0x12000, scoped, tag = 'internal scratch']
  #allocation2 [shape = 'f32[2,32]{1,0:T(2,128)}', space=vmem, size = 0x400, scoped, tag = 'scratch operand']
  #allocation3 [shape = 'f32[2,16]{1,0:T(2,128)}', space=vmem, size = 0x400, scoped, tag = 'scratch operand']
  %s0 = inlined_call_operand.hbm [shape: f32[2,32,32], index: 0, kind: input, shape index: {}]
  %s1 = inlined_call_operand.hbm [shape: f32[2,16,64], index: 1, kind: input, shape index: {}]
  %s2 = inlined_call_operand.hbm [shape: f32[32,128], index: 2, kind: input, shape index: {}]
  %s3 = inlined_call_operand.hbm [shape: f32[16,128], index: 3, kind: input, shape index: {}]
  %s4 = inlined_call_operand.vmem [shape: f32[1,128], index: 4, kind: input, shape index: {}]
  %s5 = inlined_call_operand.hbm [shape: f32[2,128], index: 5, kind: output, shape index: {}]
  %s6 = sld [smem:[#allocation0]]
  $region54: #{tpu_custom_call.1} parent=0
    _
  %s8 = ssub.s32 1, %s6
  %s9 = scalar_select 0, %s8, %s6
  $region1: #{tpu_custom_call.1} parent=0
    #allocation4 [shape = 'u8[32768]{0}', space=vmem, size = 0x8000, scoped, tag = 'input window, operand 0, single buffered']
    #allocation5 [shape = 's32[1]{0}', space=sflag, size = 0x4, scoped, tag = 'scoped memory for tpu_custom_call.1']
    #allocation6 [shape = 's32[1]{0}', space=sflag, size = 0x4, scoped, tag = 'scoped memory for tpu_custom_call.1']
    #allocation7 [shape = 'u8[16384]{0}', space=vmem, size = 0x4000, scoped, tag = 'input window, operand 1, single buffered']
    #allocation8 [shape = 's32[1]{0}', space=sflag, size = 0x4, scoped, tag = 'scoped memory for tpu_custom_call.1']
    #allocation9 [shape = 'u8[16384]{0}', space=vmem, size = 0x4000, scoped, tag = 'input window, operand 2, single buffered']
    #allocation10 [shape = 'u8[8192]{0}', space=vmem, size = 0x2000, scoped, tag = 'input window, operand 3, single buffered']
    #allocation11 [shape = 's32[1]{0}', space=sflag, size = 0x4, scoped, tag = 'scoped memory for tpu_custom_call.1']
    #allocation12 [shape = 'u8[1024]{0}', space=vmem, size = 0x400, scoped, tag = 'output window, operand 0, single buffered']
    %10 = vsyncpa [#allocation5], 0
    %11 = vsyncpa [#allocation8], 0
    %12 = vsyncpa [#allocation11], 0
    %13 = vsyncpa [#allocation6], 0
    // Predicated region
    $region2: #{tpu_custom_call.1} parent=1 // pred_check
      _
    $region3: #{tpu_custom_call.1} parent=1 // pred_check_branch
      %15 = sbr.rel (0) target = $region5
    $region4: #{tpu_custom_call.1} parent=1 // pred_region
      %s17 = ssub.s32 1024, 1024
      %18 = vsyncadd [#allocation5], %s17
      %s19 = sshll.u32 [#allocation4], 4
      %s20 = int_to_ptr.vmem [resolvable:$true] %s19
      %25 = dma.hbm_to_vmem [thread:$0]  %s0, 1024, %s20, [#allocation5], 128, 128, 8
    $region5: #{tpu_custom_call.1} parent=1 // pred_fallthru
      _
    // Predicated region
    $region6: #{tpu_custom_call.1} parent=1 // pred_check
      _
    $region7: #{tpu_custom_call.1} parent=1 // pred_check_branch
      %27 = sbr.rel (0) target = $region9
    $region8: #{tpu_custom_call.1} parent=1 // pred_region
      %s29 = ssub.s32 512, 512
      %30 = vsyncadd [#allocation8], %s29
      %s31 = sshll.u32 [#allocation7], 4
      %s32 = int_to_ptr.vmem [resolvable:$true] %s31
      %37 = dma.hbm_to_vmem [thread:$0]  %s1, 512, %s32, [#allocation8], 128, 128, 8
    $region9: #{tpu_custom_call.1} parent=1 // pred_fallthru
      _
    // Predicated region
    $region10: #{tpu_custom_call.1} parent=1 // pred_check
      _
    $region11: #{tpu_custom_call.1} parent=1 // pred_check_branch
      %39 = sbr.rel (0) target = $region13
    $region12: #{tpu_custom_call.1} parent=1 // pred_region
      %s41 = ssub.s32 512, 512
      %42 = vsyncadd [#allocation8], %s41
      %s43 = sshll.u32 [#allocation9], 4
      %s44 = int_to_ptr.vmem [resolvable:$true] %s43
      %49 = dma.hbm_to_vmem [thread:$0]  %s2, 512, %s44, [#allocation8], 128, 128, 8
    $region13: #{tpu_custom_call.1} parent=1 // pred_fallthru
      _
    // Predicated region
    $region14: #{tpu_custom_call.1} parent=1 // pred_check
      _
    $region15: #{tpu_custom_call.1} parent=1 // pred_check_branch
      %51 = sbr.rel (0) target = $region17
    $region16: #{tpu_custom_call.1} parent=1 // pred_region
      %s53 = ssub.s32 256, 256
      %54 = vsyncadd [#allocation11], %s53
      %s55 = sshll.u32 [#allocation10], 4
      %s56 = int_to_ptr.vmem [resolvable:$true] %s55
      %61 = dma.hbm_to_vmem [thread:$0]  %s3, 256, %s56, [#allocation11], 128, 128, 8
    $region17: #{tpu_custom_call.1} parent=1 // pred_fallthru
      _
    // Predicated region
    $region18: #{tpu_custom_call.1} parent=1 // pred_check
      _
    $region19: #{tpu_custom_call.1} parent=1 // pred_check_branch
      %63 = sbr.rel (0) target = $region21
    $region20: #{tpu_custom_call.1} parent=1 // pred_region
      _
    $region21: #{tpu_custom_call.1} parent=1 // pred_fallthru
      _
    // Predicated region
    $region22: #{tpu_custom_call.1} parent=1 // pred_check
      _
    $region23: #{tpu_custom_call.1} parent=1 // pred_check_branch
      %65 = sbr.rel (0) target = $region25
    $region24: #{tpu_custom_call.1} parent=1 // pred_region
      %66 = dma.done [#allocation5], 1024
    $region25: #{tpu_custom_call.1} parent=1 // pred_fallthru
      _
    // Predicated region
    $region26: #{tpu_custom_call.1} parent=1 // pred_check
      _
    $region27: #{tpu_custom_call.1} parent=1 // pred_check_branch
      %68 = sbr.rel (0) target = $region29
    $region28: #{tpu_custom_call.1} parent=1 // pred_region
      %69 = dma.done [#allocation8], 512
    $region29: #{tpu_custom_call.1} parent=1 // pred_fallthru
      _
    // Predicated region
    $region30: #{tpu_custom_call.1} parent=1 // pred_check
      _
    $region31: #{tpu_custom_call.1} parent=1 // pred_check_branch
      %71 = sbr.rel (0) target = $region33
    $region32: #{tpu_custom_call.1} parent=1 // pred_region
      %72 = dma.done [#allocation8], 512
    $region33: #{tpu_custom_call.1} parent=1 // pred_fallthru
      _
    // Predicated region
    $region34: #{tpu_custom_call.1} parent=1 // pred_check
      _
    $region35: #{tpu_custom_call.1} parent=1 // pred_check_branch
      %74 = sbr.rel (0) target = $region37
    $region36: #{tpu_custom_call.1} parent=1 // pred_region
      %75 = dma.done [#allocation11], 256
    $region37: #{tpu_custom_call.1} parent=1 // pred_fallthru
      _
    %p76 = scmp.eq.s32.totalorder 0, 0
    // Predicated region
    $region38: #{tpu_custom_call.1} parent=1 // pred_check
      %p77 = pneg %p76
    $region39: #{tpu_custom_call.1} parent=1 // pred_check_branch
      %79 = sbr.rel (%p77) target = $region41
    $region40: #{tpu_custom_call.1} parent=1 // pred_region
      %vm80 = vcmask 254976
      %81 = vst.msk [vmem:[#allocation2] sm:$0x3] %vm80, 0.0
      %vm82 = vcmask 123904
      %83 = vst.msk [vmem:[#allocation3] sm:$0x3] %vm82, 0.0
    $region41: #{tpu_custom_call.1} parent=1 // pred_fallthru
      _
    %v84 = vld [vmem:[#allocation2] sm:$0x3]
    %v85 = vld [vmem:[#allocation4] sm:$0xff]
    %v86 = vld [vmem:[#allocation4 + $0x8] sm:$0xff]
    %v87 = vld [vmem:[#allocation4 + $0x10] sm:$0xff]
    %v88 = vld [vmem:[#allocation4 + $0x18] sm:$0xff]
    %v89 = vld [vmem:[#allocation4 + $0x20] sm:$0xff]
    %v90 = vld [vmem:[#allocation4 + $0x28] sm:$0xff]
    %v91 = vld [vmem:[#allocation4 + $0x30] sm:$0xff]
    %v92 = vld [vmem:[#allocation4 + $0x38] sm:$0xff]
    %vm93 = vcmask 261120
    %v94 = vsel %vm93, %v85, 0.0
    %95 = vadd.xlane.f32.xlu0 %v94
    %v96 = vpop.xlane.xlu0 %95
    %v97 = vsel %vm93, %v86, 0.0
    %98 = vadd.xlane.f32.xlu0 %v97
    %v99 = vpop.xlane.xlu0 %98
    %v100 = vsel %vm93, %v87, 0.0
    %101 = vadd.xlane.f32.xlu0 %v100
    %v102 = vpop.xlane.xlu0 %101
    %v103 = vsel %vm93, %v88, 0.0
    %104 = vadd.xlane.f32.xlu0 %v103
    %v105 = vpop.xlane.xlu0 %104
    %v106 = vsel %vm93, %v89, 0.0
    %107 = vadd.xlane.f32.xlu0 %v106
    %v108 = vpop.xlane.xlu0 %107
    %v109 = vsel %vm93, %v90, 0.0
    %110 = vadd.xlane.f32.xlu0 %v109
    %v111 = vpop.xlane.xlu0 %110
    %v112 = vsel %vm93, %v91, 0.0
    %113 = vadd.xlane.f32.xlu0 %v112
    %v114 = vpop.xlane.xlu0 %113
    %v115 = vsel %vm93, %v92, 0.0
    %116 = vadd.xlane.f32.xlu0 %v115
    %v117 = vpop.xlane.xlu0 %116
    %v126 = vlaneseq
    %v127 = vand.u32 %v126, 127
    %v128 = vlaneseq
    %v129 = vshrl.u32 %v128, 7
    %v130 = vsub.s32 %v127, %v129
    %v131 = vrot.slane %v96, %v130
    %v132 = vadd.s32 %v127, 4294967288
    %v133 = vlaneseq
    %v134 = vshrl.u32 %v133, 7
    %v135 = vsub.s32 %v132, %v134
    %v136 = vrot.slane %v99, %v135
    %vm137 = vcmask 130112
    %v138 = vsel %vm137, %v136, %v131
    %v139 = vadd.s32 %v127, 4294967280
    %v140 = vlaneseq
    %v141 = vshrl.u32 %v140, 7
    %v142 = vsub.s32 %v139, %v141
    %v143 = vrot.slane %v102, %v142
    %vm144 = vcmask 195712
    %v145 = vsel %vm144, %v143, %v138
    %v146 = vadd.s32 %v127, 4294967272
    %v147 = vlaneseq
    %v148 = vshrl.u32 %v147, 7
    %v149 = vsub.s32 %v146, %v148
    %v150 = vrot.slane %v105, %v149
    %vm151 = vcmask 261312
    %v152 = vsel %vm151, %v150, %v145
    %v153 = vlaneseq
    %v154 = vshrl.u32 %v153, 7
    %v155 = vsub.s32 %v127, %v154
    %v156 = vrot.slane %v108, %v155
    %v157 = vlaneseq
    %v158 = vshrl.u32 %v157, 7
    %v159 = vsub.s32 %v132, %v158
    %v160 = vrot.slane %v111, %v159
    %v161 = vsel %vm137, %v160, %v156
    %v162 = vlaneseq
    %v163 = vshrl.u32 %v162, 7
    %v164 = vsub.s32 %v139, %v163
    %v165 = vrot.slane %v114, %v164
    %v166 = vsel %vm144, %v165, %v161
    %v167 = vlaneseq
    %v168 = vshrl.u32 %v167, 7
    %v169 = vsub.s32 %v146, %v168
    %v170 = vrot.slane %v117, %v169
    %v171 = vsel %vm151, %v170, %v166
    %vm172 = vcmask 1041409
    %v173 = vsel %vm172, %v171, %v152
    %v175 = vadd.f32 %v84, %v173
    %vm176 = vcmask 254976
    %177 = vst.msk [vmem:[#allocation2] sm:$0x3] %vm176, %v175
    %v178 = vld [vmem:[#allocation3] sm:$0x3]
    %v179 = vld [vmem:[#allocation7] sm:$0xff]
    %v180 = vld [vmem:[#allocation7 + $0x8] sm:$0xff]
    %v181 = vld [vmem:[#allocation7 + $0x10] sm:$0xff]
    %v182 = vld [vmem:[#allocation7 + $0x18] sm:$0xff]
    %vm183 = vcmask 523264
    %v184 = vsel %vm183, %v179, 0.0
    %185 = vadd.xlane.f32.xlu0 %v184
    %v186 = vpop.xlane.xlu0 %185
    %v187 = vsel %vm183, %v180, 0.0
    %188 = vadd.xlane.f32.xlu0 %v187
    %v189 = vpop.xlane.xlu0 %188
    %v190 = vsel %vm183, %v181, 0.0
    %191 = vadd.xlane.f32.xlu0 %v190
    %v192 = vpop.xlane.xlu0 %191
    %v193 = vsel %vm183, %v182, 0.0
    %194 = vadd.xlane.f32.xlu0 %v193
    %v195 = vpop.xlane.xlu0 %194
    %v200 = vlaneseq
    %v201 = vshrl.u32 %v200, 7
    %v202 = vsub.s32 %v127, %v201
    %v203 = vrot.slane %v186, %v202
    %v204 = vlaneseq
    %v205 = vshrl.u32 %v204, 7
    %v206 = vsub.s32 %v132, %v205
    %v207 = vrot.slane %v189, %v206
    %v208 = vsel %vm137, %v207, %v203
    %v209 = vlaneseq
    %v210 = vshrl.u32 %v209, 7
    %v211 = vsub.s32 %v127, %v210
    %v212 = vrot.slane %v192, %v211
    %v213 = vlaneseq
    %v214 = vshrl.u32 %v213, 7
    %v215 = vsub.s32 %v132, %v214
    %v216 = vrot.slane %v195, %v215
    %v217 = vsel %vm137, %v216, %v212
    %v218 = vsel %vm172, %v217, %v208
    %v220 = vadd.f32 %v178, %v218
    %vm221 = vcmask 123904
    %222 = vst.msk [vmem:[#allocation3] sm:$0x3] %vm221, %v220
    // Predicated region
    $region42: #{tpu_custom_call.1} parent=1 // pred_check
      %p223 = pneg %p76
    $region43: #{tpu_custom_call.1} parent=1 // pred_check_branch
      %225 = sbr.rel (%p223) target = $region45
    $region44: #{tpu_custom_call.1} parent=1 // pred_region
      %v226 = vld [vmem:[%s4] sm:$0x1]
      %v227 = vld [vmem:[#allocation2] sm:$0x3]
      %v228 = vld [vmem:[#allocation9] sm:$0xff]
      %v229 = vld [vmem:[#allocation9 + $0x8] sm:$0xff]
      %v230 = vld [vmem:[#allocation9 + $0x10] sm:$0xff]
      %v231 = vld [vmem:[#allocation9 + $0x18] sm:$0xff]
      %v233 = vsel %vm93, %v227, 0
      %235 = vmatprep.subr.mxu0 0.0
      %236 = vmatpush1.msra.mxu0 %v228
      %237 = vmatprep.subr.mxu0 0.0
      %238 = vmatpush1.msra.mxu0 %v229
      %239 = vmatprep.subr.mxu0 0.0
      %240 = vmatpush1.msra.mxu0 %v230
      %241 = vmatprep.subr.mxu0 0.0
      %242 = vmatpush1.msra.mxu0 %v231
      %243 = vmatprep.subr.mxu0 0.0
      %244 = vmatpush1.msra.mxu0 0.0
      %245 = vmatprep.subr.mxu0 0.0
      %246 = vmatpush1.msra.mxu0 0.0
      %247 = vmatprep.subr.mxu0 0.0
      %248 = vmatpush1.msra.mxu0 0.0
      %249 = vmatprep.subr.mxu0 0.0
      %250 = vmatpush1.msra.mxu0 0.0
      %251 = vmatprep.subr.mxu0 0.0
      %252 = vmatpush1.msra.mxu0 0.0
      %253 = vmatprep.subr.mxu0 0.0
      %254 = vmatpush1.msra.mxu0 0.0
      %255 = vmatprep.subr.mxu0 0.0
      %256 = vmatpush1.msra.mxu0 0.0
      %257 = vmatprep.subr.mxu0 0.0
      %258 = vmatpush1.msra.mxu0 0.0
      %259 = vmatprep.subr.mxu0 0.0
      %260 = vmatpush1.msra.mxu0 0.0
      %261 = vmatprep.subr.mxu0 0.0
      %262 = vmatpush1.msra.mxu0 0.0
      %263 = vmatprep.subr.mxu0 0.0
      %264 = vmatpush1.msra.mxu0 0.0
      %265 = vmatprep.subr.mxu0 0.0
      %266 = vmatpush1.msra.mxu0 0.0
      %267 = vmatprep.subr.mxu0 0.0
      %268 = vmatpush1.msra.mxu0 0.0
      %269 = vmatprep.subr.mxu0 0.0
      %270 = vmatpush1.msra.mxu0 0.0
      %271 = vmatprep.subr.mxu0 0.0
      %272 = vmatpush1.msra.mxu0 0.0
      %273 = vmatprep.subr.mxu0 0.0
      %274 = vmatpush1.msra.mxu0 0.0
      %275 = vmatprep.subr.mxu0 0.0
      %276 = vmatpush1.msra.mxu0 0.0
      %277 = vmatprep.subr.mxu0 0.0
      %278 = vmatpush1.msra.mxu0 0.0
      %279 = vmatprep.subr.mxu0 0.0
      %280 = vmatpush1.msra.mxu0 0.0
      %281 = vmatprep.subr.mxu0 0.0
      %282 = vmatpush1.msra.mxu0 0.0
      %283 = vmatprep.subr.mxu0 0.0
      %284 = vmatpush1.msra.mxu0 0.0
      %285 = vmatprep.subr.mxu0 0.0
      %286 = vmatpush1.msra.mxu0 0.0
      %287 = vmatprep.subr.mxu0 0.0
      %288 = vmatpush1.msra.mxu0 0.0
      %289 = vmatprep.subr.mxu0 0.0
      %290 = vmatpush1.msra.mxu0 0.0
      %291 = vmatprep.subr.mxu0 0.0
      %292 = vmatpush1.msra.mxu0 0.0
      %293 = vmatprep.subr.mxu0 0.0
      %294 = vmatpush1.msra.mxu0 0.0
      %295 = vmatprep.subr.mxu0 0.0
      %296 = vmatpush1.msra.mxu0 0.0
      %297 = vmatprep.subr.mxu0 0.0
      %298 = vmatpush1.msra.mxu0 0.0
      %299 = vmatprep.mubr.f32.mxu0 0.0
      %300 = vmatmul.mubr.f32.gmra.mrb[0].mxu0 %v233
      %v301 = vpop.f32.mrb[0].mxu0
      %v302 = vadd.f32 0.0, %v301
      %v303 = vpop.f32.mrb[0].mxu0
      %304 = vdwg.mxu0
      %v306 = vlaneseq
      %v307 = vshrl.u32 %v306, 7
      %v308 = vsub.s32 0, %v307
      %v309 = vrot.slane %v226, %v308
      %v311 = vadd.f32 %v309, %v302
      %v312 = vld [vmem:[#allocation3] sm:$0x3]
      %v313 = vld [vmem:[#allocation10] sm:$0xff]
      %v314 = vld [vmem:[#allocation10 + $0x8] sm:$0xff]
      %vm315 = vcmask 130048
      %v317 = vsel %vm315, %v312, 0
      %319 = vmatprep.subr.mxu0 0.0
      %320 = vmatpush1.msra.mxu0 %v313
      %321 = vmatprep.subr.mxu0 0.0
      %322 = vmatpush1.msra.mxu0 %v314
      %323 = vmatprep.subr.mxu0 0.0
      %324 = vmatpush1.msra.mxu0 0.0
      %325 = vmatprep.subr.mxu0 0.0
      %326 = vmatpush1.msra.mxu0 0.0
      %327 = vmatprep.subr.mxu0 0.0
      %328 = vmatpush1.msra.mxu0 0.0
      %329 = vmatprep.subr.mxu0 0.0
      %330 = vmatpush1.msra.mxu0 0.0
      %331 = vmatprep.subr.mxu0 0.0
      %332 = vmatpush1.msra.mxu0 0.0
      %333 = vmatprep.subr.mxu0 0.0
      %334 = vmatpush1.msra.mxu0 0.0
      %335 = vmatprep.subr.mxu0 0.0
      %336 = vmatpush1.msra.mxu0 0.0
      %337 = vmatprep.subr.mxu0 0.0
      %338 = vmatpush1.msra.mxu0 0.0
      %339 = vmatprep.subr.mxu0 0.0
      %340 = vmatpush1.msra.mxu0 0.0
      %341 = vmatprep.subr.mxu0 0.0
      %342 = vmatpush1.msra.mxu0 0.0
      %343 = vmatprep.subr.mxu0 0.0
      %344 = vmatpush1.msra.mxu0 0.0
      %345 = vmatprep.subr.mxu0 0.0
      %346 = vmatpush1.msra.mxu0 0.0
      %347 = vmatprep.subr.mxu0 0.0
      %348 = vmatpush1.msra.mxu0 0.0
      %349 = vmatprep.subr.mxu0 0.0
      %350 = vmatpush1.msra.mxu0 0.0
      %351 = vmatprep.subr.mxu0 0.0
      %352 = vmatpush1.msra.mxu0 0.0
      %353 = vmatprep.subr.mxu0 0.0
      %354 = vmatpush1.msra.mxu0 0.0
      %355 = vmatprep.subr.mxu0 0.0
      %356 = vmatpush1.msra.mxu0 0.0
      %357 = vmatprep.subr.mxu0 0.0
      %358 = vmatpush1.msra.mxu0 0.0
      %359 = vmatprep.subr.mxu0 0.0
      %360 = vmatpush1.msra.mxu0 0.0
      %361 = vmatprep.subr.mxu0 0.0
      %362 = vmatpush1.msra.mxu0 0.0
      %363 = vmatprep.subr.mxu0 0.0
      %364 = vmatpush1.msra.mxu0 0.0
      %365 = vmatprep.subr.mxu0 0.0
      %366 = vmatpush1.msra.mxu0 0.0
      %367 = vmatprep.subr.mxu0 0.0
      %368 = vmatpush1.msra.mxu0 0.0
      %369 = vmatprep.subr.mxu0 0.0
      %370 = vmatpush1.msra.mxu0 0.0
      %371 = vmatprep.subr.mxu0 0.0
      %372 = vmatpush1.msra.mxu0 0.0
      %373 = vmatprep.subr.mxu0 0.0
      %374 = vmatpush1.msra.mxu0 0.0
      %375 = vmatprep.subr.mxu0 0.0
      %376 = vmatpush1.msra.mxu0 0.0
      %377 = vmatprep.subr.mxu0 0.0
      %378 = vmatpush1.msra.mxu0 0.0
      %379 = vmatprep.subr.mxu0 0.0
      %380 = vmatpush1.msra.mxu0 0.0
      %381 = vmatprep.subr.mxu0 0.0
      %382 = vmatpush1.msra.mxu0 0.0
      %383 = vmatprep.mubr.f32.mxu0 0.0
      %384 = vmatmul.mubr.f32.gmra.mrb[0].mxu0 %v317
      %v385 = vpop.f32.mrb[0].mxu0
      %v386 = vadd.f32 0.0, %v385
      %v387 = vpop.f32.mrb[0].mxu0
      %388 = vdwg.mxu0
      %v389 = vadd.f32 %v311, %v386
      %vm390 = vcmask 1041408
      %v391 = vsel %vm390, %v389, -inf
      %392 = vmax.xlane.f32.xlu0 %v391
      %v393 = vpop.xlane.xlu0 %392
      %v394 = vsub.f32 %v389, %v393
      %v395 = vmul.f32 %v394, 1.442695
      %v396 = vpow.pop %v395
      %v397 = vsel %vm390, %v396, 0.0
      %398 = vadd.xlane.f32.xlu0 %v397
      %v399 = vpop.xlane.xlu0 %398
      %v400 = vrcp.pop %v399
      %v401 = vmul.f32 %v396, %v400
      %402 = vst [vmem:[#allocation12] sm:$0x3] %v401
    $region45: #{tpu_custom_call.1} parent=1 // pred_fallthru
      _
    // Predicated region
    $region46: #{tpu_custom_call.1} parent=1 // pred_check
      _
    $region47: #{tpu_custom_call.1} parent=1 // pred_check_branch
      %404 = sbr.rel (0) target = $region49
    $region48: #{tpu_custom_call.1} parent=1 // pred_region
      %s406 = ssub.s32 32, 32
      %407 = vsyncadd [#allocation6], %s406
      %s409 = sshll.u32 [#allocation12], 4
      %s410 = int_to_ptr.vmem [resolvable:$true] %s409
      %412 = dma.vmem_to_hbm [thread:$0]  %s410, 32, %s5, [#allocation6]
    $region49: #{tpu_custom_call.1} parent=1 // pred_fallthru
      _
    // Predicated region
    $region50: #{tpu_custom_call.1} parent=1 // pred_check
      _
    $region51: #{tpu_custom_call.1} parent=1 // pred_check_branch
      %414 = sbr.rel (0) target = $region53
    $region52: #{tpu_custom_call.1} parent=1 // pred_region
      %415 = dma.done [#allocation6], 32
    $region53: #{tpu_custom_call.1} parent=1 // pred_fallthru
      _
    %416 = vsyncpa [#allocation5], 1
    %417 = vsyncpa [#allocation8], 1
    %418 = vsyncpa [#allocation11], 1
    %419 = vsyncpa [#allocation6], 1

// kernel: tpu_custom_call.1
$region0: #{tpu_custom_call.1}
  #allocation0 [shape = 'u32[]', space=smem, size = 0x4, offset = 0x4, fixed_abs, tag = 'smem constant byte address 0x4 - core index']
  #allocation1 [shape = 'u32[144,128]{1,0:T(1,128)}', space=vmem, size = 0x12000, scoped, tag = 'internal scratch']
  #allocation2 [shape = 'f32[2,32]{1,0:T(2,128)}', space=vmem, size = 0x400, scoped, tag = 'scratch operand']
  #allocation3 [shape = 'f32[2,16]{1,0:T(2,128)}', space=vmem, size = 0x400, scoped, tag = 'scratch operand']
  %s0 = inlined_call_operand.hbm [shape: f32[2,32,32], index: 0, kind: input, shape index: {}]
  %s1 = inlined_call_operand.hbm [shape: f32[2,16,64], index: 1, kind: input, shape index: {}]
  %s2 = inlined_call_operand.hbm [shape: f32[32,128], index: 2, kind: input, shape index: {}]
  %s3 = inlined_call_operand.hbm [shape: f32[16,128], index: 3, kind: input, shape index: {}]
  %s4 = inlined_call_operand.vmem [shape: f32[1,128], index: 4, kind: input, shape index: {}]
  %s5 = inlined_call_operand.hbm [shape: f32[2,128], index: 5, kind: output, shape index: {}]
  %s6 = sld [smem:[#allocation0]]
  $region54: #{tpu_custom_call.1} parent=0
    _
  %s8 = ssub.s32 1, %s6
  %s9 = scalar_select 0, %s8, %s6
  $region1: #{tpu_custom_call.1} parent=0
    #allocation4 [shape = 'u8[32768]{0}', space=vmem, size = 0x8000, scoped, tag = 'input window, operand 0, single buffered']
    #allocation5 [shape = 's32[1]{0}', space=sflag, size = 0x4, scoped, tag = 'scoped memory for tpu_custom_call.1']
    #allocation6 [shape = 's32[1]{0}', space=sflag, size = 0x4, scoped, tag = 'scoped memory for tpu_custom_call.1']
    #allocation7 [shape = 'u8[16384]{0}', space=vmem, size = 0x4000, scoped, tag = 'input window, operand 1, single buffered']
    #allocation8 [shape = 's32[1]{0}', space=sflag, size = 0x4, scoped, tag = 'scoped memory for tpu_custom_call.1']
    #allocation9 [shape = 'u8[16384]{0}', space=vmem, size = 0x4000, scoped, tag = 'input window, operand 2, single buffered']
    #allocation10 [shape = 'u8[8192]{0}', space=vmem, size = 0x2000, scoped, tag = 'input window, operand 3, single buffered']
    #allocation11 [shape = 's32[1]{0}', space=sflag, size = 0x4, scoped, tag = 'scoped memory for tpu_custom_call.1']
    #allocation12 [shape = 'u8[1024]{0}', space=vmem, size = 0x400, scoped, tag = 'output window, operand 0, single buffered']
    %10 = vsyncpa [#allocation5], 0
    %11 = vsyncpa [#allocation8], 0
    %12 = vsyncpa [#allocation11], 0
    %13 = vsyncpa [#allocation6], 0
    // Predicated region
    $region2: #{tpu_custom_call.1} parent=1 // pred_check
      _
    $region3: #{tpu_custom_call.1} parent=1 // pred_check_branch
      %15 = sbr.rel (0) target = $region5
    $region4: #{tpu_custom_call.1} parent=1 // pred_region
      %s17 = ssub.s32 1024, 1024
      %18 = vsyncadd [#allocation5], %s17
      %s19 = sshll.u32 [#allocation4], 4
      %s20 = int_to_ptr.vmem [resolvable:$true] %s19
      %25 = dma.hbm_to_vmem [thread:$0]  %s0, 1024, %s20, [#allocation5], 128, 128, 8
    $region5: #{tpu_custom_call.1} parent=1 // pred_fallthru
      _
    // Predicated region
    $region6: #{tpu_custom_call.1} parent=1 // pred_check
      _
    $region7: #{tpu_custom_call.1} parent=1 // pred_check_branch
      %27 = sbr.rel (0) target = $region9
    $region8: #{tpu_custom_call.1} parent=1 // pred_region
      %s29 = ssub.s32 512, 512
      %30 = vsyncadd [#allocation8], %s29
      %s31 = sshll.u32 [#allocation7], 4
      %s32 = int_to_ptr.vmem [resolvable:$true] %s31
      %37 = dma.hbm_to_vmem [thread:$0]  %s1, 512, %s32, [#allocation8], 128, 128, 8
    $region9: #{tpu_custom_call.1} parent=1 // pred_fallthru
      _
    // Predicated region
    $region10: #{tpu_custom_call.1} parent=1 // pred_check
      _
    $region11: #{tpu_custom_call.1} parent=1 // pred_check_branch
      %39 = sbr.rel (0) target = $region13
    $region12: #{tpu_custom_call.1} parent=1 // pred_region
      %s41 = ssub.s32 512, 512
      %42 = vsyncadd [#allocation8], %s41
      %s43 = sshll.u32 [#allocation9], 4
      %s44 = int_to_ptr.vmem [resolvable:$true] %s43
      %49 = dma.hbm_to_vmem [thread:$0]  %s2, 512, %s44, [#allocation8], 128, 128, 8
    $region13: #{tpu_custom_call.1} parent=1 // pred_fallthru
      _
    // Predicated region
    $region14: #{tpu_custom_call.1} parent=1 // pred_check
      _
    $region15: #{tpu_custom_call.1} parent=1 // pred_check_branch
      %51 = sbr.rel (0) target = $region17
    $region16: #{tpu_custom_call.1} parent=1 // pred_region
      %s53 = ssub.s32 256, 256
      %54 = vsyncadd [#allocation11], %s53
      %s55 = sshll.u32 [#allocation10], 4
      %s56 = int_to_ptr.vmem [resolvable:$true] %s55
      %61 = dma.hbm_to_vmem [thread:$0]  %s3, 256, %s56, [#allocation11], 128, 128, 8
    $region17: #{tpu_custom_call.1} parent=1 // pred_fallthru
      _
    // Predicated region
    $region18: #{tpu_custom_call.1} parent=1 // pred_check
      _
    $region19: #{tpu_custom_call.1} parent=1 // pred_check_branch
      %63 = sbr.rel (0) target = $region21
    $region20: #{tpu_custom_call.1} parent=1 // pred_region
      _
    $region21: #{tpu_custom_call.1} parent=1 // pred_fallthru
      _
    // Predicated region
    $region22: #{tpu_custom_call.1} parent=1 // pred_check
      _
    $region23: #{tpu_custom_call.1} parent=1 // pred_check_branch
      %65 = sbr.rel (0) target = $region25
    $region24: #{tpu_custom_call.1} parent=1 // pred_region
      %66 = dma.done [#allocation5], 1024
    $region25: #{tpu_custom_call.1} parent=1 // pred_fallthru
      _
    // Predicated region
    $region26: #{tpu_custom_call.1} parent=1 // pred_check
      _
    $region27: #{tpu_custom_call.1} parent=1 // pred_check_branch
      %68 = sbr.rel (0) target = $region29
    $region28: #{tpu_custom_call.1} parent=1 // pred_region
      %69 = dma.done [#allocation8], 512
    $region29: #{tpu_custom_call.1} parent=1 // pred_fallthru
      _
    // Predicated region
    $region30: #{tpu_custom_call.1} parent=1 // pred_check
      _
    $region31: #{tpu_custom_call.1} parent=1 // pred_check_branch
      %71 = sbr.rel (0) target = $region33
    $region32: #{tpu_custom_call.1} parent=1 // pred_region
      %72 = dma.done [#allocation8], 512
    $region33: #{tpu_custom_call.1} parent=1 // pred_fallthru
      _
    // Predicated region
    $region34: #{tpu_custom_call.1} parent=1 // pred_check
      _
    $region35: #{tpu_custom_call.1} parent=1 // pred_check_branch
      %74 = sbr.rel (0) target = $region37
    $region36: #{tpu_custom_call.1} parent=1 // pred_region
      %75 = dma.done [#allocation11], 256
    $region37: #{tpu_custom_call.1} parent=1 // pred_fallthru
      _
    %p76 = scmp.eq.s32.totalorder 0, 0
    // Predicated region
    $region38: #{tpu_custom_call.1} parent=1 // pred_check
      %p77 = pneg %p76
    $region39: #{tpu_custom_call.1} parent=1 // pred_check_branch
      %79 = sbr.rel (%p77) target = $region41
    $region40: #{tpu_custom_call.1} parent=1 // pred_region
      %vm80 = vcmask 254976
      %81 = vst.msk [vmem:[#allocation2] sm:$0x3] %vm80, 0.0
      %vm82 = vcmask 123904
      %83 = vst.msk [vmem:[#allocation3] sm:$0x3] %vm82, 0.0
    $region41: #{tpu_custom_call.1} parent=1 // pred_fallthru
      _
    %v84 = vld [vmem:[#allocation2] sm:$0x3]
    %v85 = vld [vmem:[#allocation4] sm:$0xff]
    %v86 = vld [vmem:[#allocation4 + $0x8] sm:$0xff]
    %v87 = vld [vmem:[#allocation4 + $0x10] sm:$0xff]
    %v88 = vld [vmem:[#allocation4 + $0x18] sm:$0xff]
    %v89 = vld [vmem:[#allocation4 + $0x20] sm:$0xff]
    %v90 = vld [vmem:[#allocation4 + $0x28] sm:$0xff]
    %v91 = vld [vmem:[#allocation4 + $0x30] sm:$0xff]
    %v92 = vld [vmem:[#allocation4 + $0x38] sm:$0xff]
    %vm93 = vcmask 261120
    %v94 = vsel %vm93, %v85, 0.0
    %95 = vadd.xlane.f32.xlu0 %v94
    %v96 = vpop.xlane.xlu0 %95
    %v97 = vsel %vm93, %v86, 0.0
    %98 = vadd.xlane.f32.xlu0 %v97
    %v99 = vpop.xlane.xlu0 %98
    %v100 = vsel %vm93, %v87, 0.0
    %101 = vadd.xlane.f32.xlu0 %v100
    %v102 = vpop.xlane.xlu0 %101
    %v103 = vsel %vm93, %v88, 0.0
    %104 = vadd.xlane.f32.xlu0 %v103
    %v105 = vpop.xlane.xlu0 %104
    %v106 = vsel %vm93, %v89, 0.0
    %107 = vadd.xlane.f32.xlu0 %v106
    %v108 = vpop.xlane.xlu0 %107
    %v109 = vsel %vm93, %v90, 0.0
    %110 = vadd.xlane.f32.xlu0 %v109
    %v111 = vpop.xlane.xlu0 %110
    %v112 = vsel %vm93, %v91, 0.0
    %113 = vadd.xlane.f32.xlu0 %v112
    %v114 = vpop.xlane.xlu0 %113
    %v115 = vsel %vm93, %v92, 0.0
    %116 = vadd.xlane.f32.xlu0 %v115
    %v117 = vpop.xlane.xlu0 %116
    %v126 = vlaneseq
    %v127 = vand.u32 %v126, 127
    %v128 = vlaneseq
    %v129 = vshrl.u32 %v128, 7
    %v130 = vsub.s32 %v127, %v129
    %v131 = vrot.slane %v96, %v130
    %v132 = vadd.s32 %v127, 4294967288
    %v133 = vlaneseq
    %v134 = vshrl.u32 %v133, 7
    %v135 = vsub.s32 %v132, %v134
    %v136 = vrot.slane %v99, %v135
    %vm137 = vcmask 130112
    %v138 = vsel %vm137, %v136, %v131
    %v139 = vadd.s32 %v127, 4294967280
    %v140 = vlaneseq
    %v141 = vshrl.u32 %v140, 7
    %v142 = vsub.s32 %v139, %v141
    %v143 = vrot.slane %v102, %v142
    %vm144 = vcmask 195712
    %v145 = vsel %vm144, %v143, %v138
    %v146 = vadd.s32 %v127, 4294967272
    %v147 = vlaneseq
    %v148 = vshrl.u32 %v147, 7
    %v149 = vsub.s32 %v146, %v148
    %v150 = vrot.slane %v105, %v149
    %vm151 = vcmask 261312
    %v152 = vsel %vm151, %v150, %v145
    %v153 = vlaneseq
    %v154 = vshrl.u32 %v153, 7
    %v155 = vsub.s32 %v127, %v154
    %v156 = vrot.slane %v108, %v155
    %v157 = vlaneseq
    %v158 = vshrl.u32 %v157, 7
    %v159 = vsub.s32 %v132, %v158
    %v160 = vrot.slane %v111, %v159
    %v161 = vsel %vm137, %v160, %v156
    %v162 = vlaneseq
    %v163 = vshrl.u32 %v162, 7
    %v164 = vsub.s32 %v139, %v163
    %v165 = vrot.slane %v114, %v164
    %v166 = vsel %vm144, %v165, %v161
    %v167 = vlaneseq
    %v168 = vshrl.u32 %v167, 7
    %v169 = vsub.s32 %v146, %v168
    %v170 = vrot.slane %v117, %v169
    %v171 = vsel %vm151, %v170, %v166
    %vm172 = vcmask 1041409
    %v173 = vsel %vm172, %v171, %v152
    %v175 = vadd.f32 %v84, %v173
    %vm176 = vcmask 254976
    %177 = vst.msk [vmem:[#allocation2] sm:$0x3] %vm176, %v175
    %v178 = vld [vmem:[#allocation3] sm:$0x3]
    %v179 = vld [vmem:[#allocation7] sm:$0xff]
    %v180 = vld [vmem:[#allocation7 + $0x8] sm:$0xff]
    %v181 = vld [vmem:[#allocation7 + $0x10] sm:$0xff]
    %v182 = vld [vmem:[#allocation7 + $0x18] sm:$0xff]
    %vm183 = vcmask 523264
    %v184 = vsel %vm183, %v179, 0.0
    %185 = vadd.xlane.f32.xlu0 %v184
    %v186 = vpop.xlane.xlu0 %185
    %v187 = vsel %vm183, %v180, 0.0
    %188 = vadd.xlane.f32.xlu0 %v187
    %v189 = vpop.xlane.xlu0 %188
    %v190 = vsel %vm183, %v181, 0.0
    %191 = vadd.xlane.f32.xlu0 %v190
    %v192 = vpop.xlane.xlu0 %191
    %v193 = vsel %vm183, %v182, 0.0
    %194 = vadd.xlane.f32.xlu0 %v193
    %v195 = vpop.xlane.xlu0 %194
    %v200 = vlaneseq
    %v201 = vshrl.u32 %v200, 7
    %v202 = vsub.s32 %v127, %v201
    %v203 = vrot.slane %v186, %v202
    %v204 = vlaneseq
    %v205 = vshrl.u32 %v204, 7
    %v206 = vsub.s32 %v132, %v205
    %v207 = vrot.slane %v189, %v206
    %v208 = vsel %vm137, %v207, %v203
    %v209 = vlaneseq
    %v210 = vshrl.u32 %v209, 7
    %v211 = vsub.s32 %v127, %v210
    %v212 = vrot.slane %v192, %v211
    %v213 = vlaneseq
    %v214 = vshrl.u32 %v213, 7
    %v215 = vsub.s32 %v132, %v214
    %v216 = vrot.slane %v195, %v215
    %v217 = vsel %vm137, %v216, %v212
    %v218 = vsel %vm172, %v217, %v208
    %v220 = vadd.f32 %v178, %v218
    %vm221 = vcmask 123904
    %222 = vst.msk [vmem:[#allocation3] sm:$0x3] %vm221, %v220
    // Predicated region
    $region42: #{tpu_custom_call.1} parent=1 // pred_check
      %p223 = pneg %p76
    $region43: #{tpu_custom_call.1} parent=1 // pred_check_branch
      %225 = sbr.rel (%p223) target = $region45
    $region44: #{tpu_custom_call.1} parent=1 // pred_region
      %v226 = vld [vmem:[%s4] sm:$0x1]
      %v227 = vld [vmem:[#allocation2] sm:$0x3]
      %v228 = vld [vmem:[#allocation9] sm:$0xff]
      %v229 = vld [vmem:[#allocation9 + $0x8] sm:$0xff]
      %v230 = vld [vmem:[#allocation9 + $0x10] sm:$0xff]
      %v231 = vld [vmem:[#allocation9 + $0x18] sm:$0xff]
      %v233 = vsel %vm93, %v227, 0
      %235 = vmatprep.subr.mxu0 0.0
      %236 = vmatpush1.msra.mxu0 %v228
      %237 = vmatprep.subr.mxu0 0.0
      %238 = vmatpush1.msra.mxu0 %v229
      %239 = vmatprep.subr.mxu0 0.0
      %240 = vmatpush1.msra.mxu0 %v230
      %241 = vmatprep.subr.mxu0 0.0
      %242 = vmatpush1.msra.mxu0 %v231
      %243 = vmatprep.subr.mxu0 0.0
      %244 = vmatpush1.msra.mxu0 0.0
      %245 = vmatprep.subr.mxu0 0.0
      %246 = vmatpush1.msra.mxu0 0.0
      %247 = vmatprep.subr.mxu0 0.0
      %248 = vmatpush1.msra.mxu0 0.0
      %249 = vmatprep.subr.mxu0 0.0
      %250 = vmatpush1.msra.mxu0 0.0
      %251 = vmatprep.subr.mxu0 0.0
      %252 = vmatpush1.msra.mxu0 0.0
      %253 = vmatprep.subr.mxu0 0.0
      %254 = vmatpush1.msra.mxu0 0.0
      %255 = vmatprep.subr.mxu0 0.0
      %256 = vmatpush1.msra.mxu0 0.0
      %257 = vmatprep.subr.mxu0 0.0
      %258 = vmatpush1.msra.mxu0 0.0
      %259 = vmatprep.subr.mxu0 0.0
      %260 = vmatpush1.msra.mxu0 0.0
      %261 = vmatprep.subr.mxu0 0.0
      %262 = vmatpush1.msra.mxu0 0.0
      %263 = vmatprep.subr.mxu0 0.0
      %264 = vmatpush1.msra.mxu0 0.0
      %265 = vmatprep.subr.mxu0 0.0
      %266 = vmatpush1.msra.mxu0 0.0
      %267 = vmatprep.subr.mxu0 0.0
      %268 = vmatpush1.msra.mxu0 0.0
      %269 = vmatprep.subr.mxu0 0.0
      %270 = vmatpush1.msra.mxu0 0.0
      %271 = vmatprep.subr.mxu0 0.0
      %272 = vmatpush1.msra.mxu0 0.0
      %273 = vmatprep.subr.mxu0 0.0
      %274 = vmatpush1.msra.mxu0 0.0
      %275 = vmatprep.subr.mxu0 0.0
      %276 = vmatpush1.msra.mxu0 0.0
      %277 = vmatprep.subr.mxu0 0.0
      %278 = vmatpush1.msra.mxu0 0.0
      %279 = vmatprep.subr.mxu0 0.0
      %280 = vmatpush1.msra.mxu0 0.0
      %281 = vmatprep.subr.mxu0 0.0
      %282 = vmatpush1.msra.mxu0 0.0
      %283 = vmatprep.subr.mxu0 0.0
      %284 = vmatpush1.msra.mxu0 0.0
      %285 = vmatprep.subr.mxu0 0.0
      %286 = vmatpush1.msra.mxu0 0.0
      %287 = vmatprep.subr.mxu0 0.0
      %288 = vmatpush1.msra.mxu0 0.0
      %289 = vmatprep.subr.mxu0 0.0
      %290 = vmatpush1.msra.mxu0 0.0
      %291 = vmatprep.subr.mxu0 0.0
      %292 = vmatpush1.msra.mxu0 0.0
      %293 = vmatprep.subr.mxu0 0.0
      %294 = vmatpush1.msra.mxu0 0.0
      %295 = vmatprep.subr.mxu0 0.0
      %296 = vmatpush1.msra.mxu0 0.0
      %297 = vmatprep.subr.mxu0 0.0
      %298 = vmatpush1.msra.mxu0 0.0
      %299 = vmatprep.mubr.f32.mxu0 0.0
      %300 = vmatmul.mubr.f32.gmra.mrb[0].mxu0 %v233
      %v301 = vpop.f32.mrb[0].mxu0
      %v302 = vadd.f32 0.0, %v301
      %v303 = vpop.f32.mrb[0].mxu0
      %304 = vdwg.mxu0
      %v306 = vlaneseq
      %v307 = vshrl.u32 %v306, 7
      %v308 = vsub.s32 0, %v307
      %v309 = vrot.slane %v226, %v308
      %v311 = vadd.f32 %v309, %v302
      %v312 = vld [vmem:[#allocation3] sm:$0x3]
      %v313 = vld [vmem:[#allocation10] sm:$0xff]
      %v314 = vld [vmem:[#allocation10 + $0x8] sm:$0xff]
      %vm315 = vcmask 130048
      %v317 = vsel %vm315, %v312, 0
      %319 = vmatprep.subr.mxu0 0.0
      %320 = vmatpush1.msra.mxu0 %v313
      %321 = vmatprep.subr.mxu0 0.0
      %322 = vmatpush1.msra.mxu0 %v314
      %323 = vmatprep.subr.mxu0 0.0
      %324 = vmatpush1.msra.mxu0 0.0
      %325 = vmatprep.subr.mxu0 0.0
      %326 = vmatpush1.msra.mxu0 0.0
      %327 = vmatprep.subr.mxu0 0.0
      %328 = vmatpush1.msra.mxu0 0.0
      %329 = vmatprep.subr.mxu0 0.0
      %330 = vmatpush1.msra.mxu0 0.0
      %331 = vmatprep.subr.mxu0 0.0
      %332 = vmatpush1.msra.mxu0 0.0
      %333 = vmatprep.subr.mxu0 0.0
      %334 = vmatpush1.msra.mxu0 0.0
      %335 = vmatprep.subr.mxu0 0.0
      %336 = vmatpush1.msra.mxu0 0.0
      %337 = vmatprep.subr.mxu0 0.0
      %338 = vmatpush1.msra.mxu0 0.0
      %339 = vmatprep.subr.mxu0 0.0
      %340 = vmatpush1.msra.mxu0 0.0
      %341 = vmatprep.subr.mxu0 0.0
      %342 = vmatpush1.msra.mxu0 0.0
      %343 = vmatprep.subr.mxu0 0.0
      %344 = vmatpush1.msra.mxu0 0.0
      %345 = vmatprep.subr.mxu0 0.0
      %346 = vmatpush1.msra.mxu0 0.0
      %347 = vmatprep.subr.mxu0 0.0
      %348 = vmatpush1.msra.mxu0 0.0
      %349 = vmatprep.subr.mxu0 0.0
      %350 = vmatpush1.msra.mxu0 0.0
      %351 = vmatprep.subr.mxu0 0.0
      %352 = vmatpush1.msra.mxu0 0.0
      %353 = vmatprep.subr.mxu0 0.0
      %354 = vmatpush1.msra.mxu0 0.0
      %355 = vmatprep.subr.mxu0 0.0
      %356 = vmatpush1.msra.mxu0 0.0
      %357 = vmatprep.subr.mxu0 0.0
      %358 = vmatpush1.msra.mxu0 0.0
      %359 = vmatprep.subr.mxu0 0.0
      %360 = vmatpush1.msra.mxu0 0.0
      %361 = vmatprep.subr.mxu0 0.0
      %362 = vmatpush1.msra.mxu0 0.0
      %363 = vmatprep.subr.mxu0 0.0
      %364 = vmatpush1.msra.mxu0 0.0
      %365 = vmatprep.subr.mxu0 0.0
      %366 = vmatpush1.msra.mxu0 0.0
      %367 = vmatprep.subr.mxu0 0.0
      %368 = vmatpush1.msra.mxu0 0.0
      %369 = vmatprep.subr.mxu0 0.0
      %370 = vmatpush1.msra.mxu0 0.0
      %371 = vmatprep.subr.mxu0 0.0
      %372 = vmatpush1.msra.mxu0 0.0
      %373 = vmatprep.subr.mxu0 0.0
      %374 = vmatpush1.msra.mxu0 0.0
      %375 = vmatprep.subr.mxu0 0.0
      %376 = vmatpush1.msra.mxu0 0.0
      %377 = vmatprep.subr.mxu0 0.0
      %378 = vmatpush1.msra.mxu0 0.0
      %379 = vmatprep.subr.mxu0 0.0
      %380 = vmatpush1.msra.mxu0 0.0
      %381 = vmatprep.subr.mxu0 0.0
      %382 = vmatpush1.msra.mxu0 0.0
      %383 = vmatprep.mubr.f32.mxu0 0.0
      %384 = vmatmul.mubr.f32.gmra.mrb[0].mxu0 %v317
      %v385 = vpop.f32.mrb[0].mxu0
      %v386 = vadd.f32 0.0, %v385
      %v387 = vpop.f32.mrb[0].mxu0
      %388 = vdwg.mxu0
      %v389 = vadd.f32 %v311, %v386
      %vm390 = vcmask 1041408
      %v391 = vsel %vm390, %v389, -inf
      %392 = vmax.xlane.f32.xlu0 %v391
      %v393 = vpop.xlane.xlu0 %392
      %v394 = vsub.f32 %v389, %v393
      %v395 = vmul.f32 %v394, 1.442695
      %v396 = vpow.pop %v395
      %v397 = vsel %vm390, %v396, 0.0
      %398 = vadd.xlane.f32.xlu0 %v397
      %v399 = vpop.xlane.xlu0 %398
      %v400 = vrcp.pop %v399
      %v401 = vmul.f32 %v396, %v400
      %402 = vst [vmem:[#allocation12] sm:$0x3] %v401
    $region45: #{tpu_custom_call.1} parent=1 // pred_fallthru
      _
    // Predicated region
    $region46: #{tpu_custom_call.1} parent=1 // pred_check
      _
    $region47: #{tpu_custom_call.1} parent=1 // pred_check_branch
      %404 = sbr.rel (0) target = $region49
    $region48: #{tpu_custom_call.1} parent=1 // pred_region
      %s406 = ssub.s32 32, 32
      %407 = vsyncadd [#allocation6], %s406
      %s409 = sshll.u32 [#allocation12], 4
      %s410 = int_to_ptr.vmem [resolvable:$true] %s409
      %412 = dma.vmem_to_hbm [thread:$0]  %s410, 32, %s5, [#allocation6]
    $region49: #{tpu_custom_call.1} parent=1 // pred_fallthru
      _
    // Predicated region
    $region50: #{tpu_custom_call.1} parent=1 // pred_check
      _
    $region51: #{tpu_custom_call.1} parent=1 // pred_check_branch
      %414 = sbr.rel (0) target = $region53
    $region52: #{tpu_custom_call.1} parent=1 // pred_region
      %415 = dma.done [#allocation6], 32
    $region53: #{tpu_custom_call.1} parent=1 // pred_fallthru
      _
    %416 = vsyncpa [#allocation5], 1
    %417 = vsyncpa [#allocation8], 1
    %418 = vsyncpa [#allocation11], 1
    %419 = vsyncpa [#allocation6], 1

</llo_original>
